<compile_context>
chip_gen: v5e
topology: v5e:2x2
jax: 0.10.0
libtpu: 0.0.40
codegen_flags: <defaults>
</compile_context>

<pallas_src>
import numpy as np
import jax
import jax.numpy as jnp
from jax.experimental import pallas as pl
from jax.experimental.pallas import tpu as pltpu


VALUE_LANES = 128  # lane-dense value output slab width (sliced to 1 col outside)


def mlp_base_fused_kernel(
    x_ref,
    w1_ref, b1_ref,      # fused layer 1: (num_inputs, Fp), (1, Fp)
    w2_ref, b2_ref,      # fused layer 2 (block-diagonal): (Fp, Fp), (1, Fp)
    wcl_ref, bcl_ref,    # critic head as a row: (1, Fp) (actor/pad lanes zeroed), (1, 1)
    h2_ref, value_ref,   # outputs: (block_b, Fp), (block_b, VALUE_LANES)
):
    mm_dtype = w1_ref.dtype  # f32 or bf16 (matmul-input dtype)

    x = x_ref[...].astype(mm_dtype)

    # fused Linear -> tanh (critic lanes [0:H], actor lanes [H:2H])
    h1 = jnp.tanh(
        jnp.dot(x, w1_ref[...], preferred_element_type=jnp.float32) + b1_ref[...]
    )
    # fused Linear -> tanh (block-diagonal keeps the two trunks independent)
    h2 = jnp.tanh(
        jnp.dot(h1.astype(mm_dtype), w2_ref[...], preferred_element_type=jnp.float32)
        + b2_ref[...]
    )

    # critic_linear (out_features=1): cross-lane reduction instead of an N=1 MXU matmul.
    v = jnp.sum(h2 * wcl_ref[...], axis=-1, keepdims=True) + bcl_ref[...]

    h2_ref[...] = h2.astype(h2_ref.dtype)
    # lane-dense store (broadcast across 128 lanes); column 0 is sliced in the wrapper.
    value_ref[...] = jnp.broadcast_to(v, value_ref.shape).astype(value_ref.dtype)


def _pick_block_b(B):
    # Large batch tile amortizes per-grid-step overhead; prefer >=2 grid steps
    # (block_b <= B/2) so v7x can shard the batch axis across its 2 TensorCores.
    for cand in (1024, 512, 256, 128, 64, 32, 16, 8):
        if cand < B and B % cand == 0:
            return cand
    return B


def pack_params(params, matmul_dtype=jnp.float32):
    """Fuse actor+critic weights into one lane-dense (padded to x128) trunk."""
    num_inputs, hidden = params["wc1"].shape
    F = 2 * hidden
    Fp = ((F + 127) // 128) * 128  # zero-pad fused width to a multiple of 128 lanes

    w1 = jnp.zeros((num_inputs, Fp), jnp.float32)
    w1 = w1.at[:, :hidden].set(params["wc1"]).at[:, hidden:F].set(params["wa1"])
    b1 = jnp.zeros((1, Fp), jnp.float32)
    b1 = b1.at[:, :hidden].set(params["bc1"]).at[:, hidden:F].set(params["ba1"])

    w2 = jnp.zeros((Fp, Fp), jnp.float32)
    w2 = (
        w2.at[:hidden, :hidden].set(params["wc2"])
          .at[hidden:F, hidden:F].set(params["wa2"])
    )
    b2 = jnp.zeros((1, Fp), jnp.float32)
    b2 = b2.at[:, :hidden].set(params["bc2"]).at[:, hidden:F].set(params["ba2"])

    wcl = jnp.zeros((1, Fp), jnp.float32)
    wcl = wcl.at[:, :hidden].set(params["wcl"].reshape(1, hidden))
    bcl = params["bcl"].reshape(1, 1).astype(jnp.float32)

    return {
        "w1": w1.astype(matmul_dtype), "b1": b1,
        "w2": w2.astype(matmul_dtype), "b2": b2,
        "wcl": wcl, "bcl": bcl,
        "hidden": hidden, "num_inputs": num_inputs, "fp": Fp,
    }


def mlp_base_forward(x, packed, *, block_b=None):
    """Returns (value (B, 1), hidden_actor (B, hidden)) like MLPBase.forward."""
    B, num_inputs = x.shape
    hidden = packed["hidden"]
    Fp = packed["fp"]
    assert num_inputs == packed["num_inputs"]

    if block_b is None:
        block_b = _pick_block_b(B)
    assert B % block_b == 0, "batch must be a multiple of block_b"
    grid = (B // block_b,)

    # Weights/biases: full arrays, resident across the batch grid.
    def const_spec(shape):
        return pl.BlockSpec(shape, lambda i: (0, 0))

    in_specs = [
        pl.BlockSpec((block_b, num_inputs), lambda i: (i, 0)),  # x batch tile
        const_spec((num_inputs, Fp)), const_spec((1, Fp)),      # fused layer 1
        const_spec((Fp, Fp)),         const_spec((1, Fp)),      # fused layer 2
        const_spec((1, Fp)),          const_spec((1, 1)),       # critic head row + bias
    ]
    out_specs = [
        pl.BlockSpec((block_b, Fp), lambda i: (i, 0)),           # fused hidden slab
        pl.BlockSpec((block_b, VALUE_LANES), lambda i: (i, 0)),  # lane-dense value slab
    ]
    out_shape = [
        jax.ShapeDtypeStruct((B, Fp), jnp.float32),
        jax.ShapeDtypeStruct((B, VALUE_LANES), jnp.float32),
    ]

    h2_slab, value_slab = pl.pallas_call(
        mlp_base_fused_kernel,
        grid_spec=pltpu.PrefetchScalarGridSpec(
            num_scalar_prefetch=0,
            grid=grid,
            in_specs=in_specs,
            out_specs=out_specs,
        ),
        out_shape=out_shape,
        compiler_params=pltpu.CompilerParams(
            dimension_semantics=("parallel",)
        ),
    )(x, packed["w1"], packed["b1"], packed["w2"], packed["b2"],
      packed["wcl"], packed["bcl"])

    # Layout plumbing outside the kernel (keeps in-kernel stores unmasked/lane-dense).
    value = value_slab[:, :1]
    hidden_actor = h2_slab[:, hidden:2 * hidden]
    return value, hidden_actor


def init_params(key, num_inputs, hidden_size):
    """Deterministic synthetic init mirroring MLPBase.__init__:
    orthogonal weights with gain sqrt(2), zero biases. Stored as (in, out)."""
    gain = np.sqrt(2.0)
    ortho = jax.nn.initializers.orthogonal(scale=gain)
    ks = jax.random.split(key, 5)
    params = {
        "wa1": ortho(ks[0], (num_inputs, hidden_size), jnp.float32),
        "ba1": jnp.zeros((1, hidden_size), jnp.float32),
        "wa2": ortho(ks[1], (hidden_size, hidden_size), jnp.float32),
        "ba2": jnp.zeros((1, hidden_size), jnp.float32),
        "wc1": ortho(ks[2], (num_inputs, hidden_size), jnp.float32),
        "bc1": jnp.zeros((1, hidden_size), jnp.float32),
        "wc2": ortho(ks[3], (hidden_size, hidden_size), jnp.float32),
        "bc2": jnp.zeros((1, hidden_size), jnp.float32),
        "wcl": ortho(ks[4], (hidden_size, 1), jnp.float32),
        "bcl": jnp.zeros((1, 1), jnp.float32),
    }
    return params


def mlp_base_ref(x, p):
    """Pure-JAX reference (unfused) for correctness check."""
    hc = jnp.tanh(x @ p["wc1"] + p["bc1"])
    hc = jnp.tanh(hc @ p["wc2"] + p["bc2"])
    ha = jnp.tanh(x @ p["wa1"] + p["ba1"])
    ha = jnp.tanh(ha @ p["wa2"] + p["ba2"])
    v = hc @ p["wcl"] + p["bcl"]
    return v, ha


if __name__ == "__main__":
    key = jax.random.PRNGKey(0)
    k_x, k_p = jax.random.split(key)

    B, num_inputs, hidden = 8, 16, 64
    x = jax.random.normal(k_x, (B, num_inputs), dtype=jnp.float32)
    params = init_params(k_p, num_inputs, hidden)

    # f32 matmuls here so the small-shape exactness check is tight.
    # For v6e/v7x throughput use: packed = pack_params(params, jnp.bfloat16)
    packed = pack_params(params, matmul_dtype=jnp.float32)

    value, hidden_actor = mlp_base_forward(x, packed)
    jax.block_until_ready((value, hidden_actor))

    v_ref, ha_ref = mlp_base_ref(x, params)
    np.testing.assert_allclose(np.asarray(value), np.asarray(v_ref), rtol=1e-5, atol=1e-5)
    np.testing.assert_allclose(np.asarray(hidden_actor), np.asarray(ha_ref), rtol=1e-5, atol=1e-5)

    assert value.shape == (B, 1) and hidden_actor.shape == (B, hidden)
    print("KERNEL_OK")
</pallas_src>

<mosaic_0001>
module attributes {stable_mosaic.version = 11 : i64} {
  func.func @mlp_base_fused_kernel(%arg0: i32, %arg1: memref<8x16xf32, #tpu.memory_space<vmem>>, %arg2: memref<16x128xf32, #tpu.memory_space<vmem>>, %arg3: memref<1x128xf32, #tpu.memory_space<vmem>>, %arg4: memref<128x128xf32, #tpu.memory_space<vmem>>, %arg5: memref<1x128xf32, #tpu.memory_space<vmem>>, %arg6: memref<1x128xf32, #tpu.memory_space<vmem>>, %arg7: memref<1x1xf32, #tpu.memory_space<vmem>>, %arg8: memref<8x128xf32, #tpu.memory_space<vmem>>, %arg9: memref<8x128xf32, #tpu.memory_space<vmem>>) attributes {dimension_semantics = [#tpu.dimension_semantics<parallel>], iteration_bounds = array<i64: 1>, scalar_prefetch = 0 : i64, scratch_operands = 0 : i64, tpu.core_type = #tpu.core_type<tc>, window_params = [{transform_indices = @transform_0, window_bounds = array<i64: 8, 16>}, {pipeline_mode = #tpu.pipeline_mode<synchronous>, transform_indices = @transform_1, window_bounds = array<i64: 16, 128>}, {pipeline_mode = #tpu.pipeline_mode<synchronous>, transform_indices = @transform_2, window_bounds = array<i64: 1, 128>}, {pipeline_mode = #tpu.pipeline_mode<synchronous>, transform_indices = @transform_3, window_bounds = array<i64: 128, 128>}, {pipeline_mode = #tpu.pipeline_mode<synchronous>, transform_indices = @transform_4, window_bounds = array<i64: 1, 128>}, {pipeline_mode = #tpu.pipeline_mode<synchronous>, transform_indices = @transform_5, window_bounds = array<i64: 1, 128>}, {pipeline_mode = #tpu.pipeline_mode<synchronous>, transform_indices = @transform_6, window_bounds = array<i64: 1, 1>}, {transform_indices = @transform_7, window_bounds = array<i64: 8, 128>}, {transform_indices = @transform_8, window_bounds = array<i64: 8, 128>}]} {
    %c0 = arith.constant 0 : index
    %c0_0 = arith.constant 0 : index
    %0 = vector.load %arg1[%c0, %c0_0] : memref<8x16xf32, #tpu.memory_space<vmem>>, vector<8x16xf32>
    %c0_1 = arith.constant 0 : index
    %c0_2 = arith.constant 0 : index
    %1 = vector.load %arg2[%c0_1, %c0_2] : memref<16x128xf32, #tpu.memory_space<vmem>>, vector<16x128xf32>
    %cst = arith.constant dense<0.000000e+00> : vector<8x128xf32>
    %2 = tpu.matmul %0, %1, %cst {dimension_numbers = #tpu.dot_dimension_numbers<[1], [0], [0], [1], [0, 0, 1, 1], [], []>} : vector<8x16xf32>, vector<16x128xf32>, vector<8x128xf32> -> vector<8x128xf32>
    %c0_3 = arith.constant 0 : index
    %c0_4 = arith.constant 0 : index
    %3 = vector.load %arg3[%c0_3, %c0_4] : memref<1x128xf32, #tpu.memory_space<vmem>>, vector<1x128xf32>
    %4 = vector.broadcast %3 : vector<1x128xf32> to vector<8x128xf32>
    %5 = arith.addf %2, %4 : vector<8x128xf32>
    %6 = math.tanh %5 : vector<8x128xf32>
    %c0_5 = arith.constant 0 : index
    %c0_6 = arith.constant 0 : index
    %7 = vector.load %arg4[%c0_5, %c0_6] : memref<128x128xf32, #tpu.memory_space<vmem>>, vector<128x128xf32>
    %cst_7 = arith.constant dense<0.000000e+00> : vector<8x128xf32>
    %8 = tpu.matmul %6, %7, %cst_7 {dimension_numbers = #tpu.dot_dimension_numbers<[1], [0], [0], [1], [0, 0, 1, 1], [], []>} : vector<8x128xf32>, vector<128x128xf32>, vector<8x128xf32> -> vector<8x128xf32>
    %c0_8 = arith.constant 0 : index
    %c0_9 = arith.constant 0 : index
    %9 = vector.load %arg5[%c0_8, %c0_9] : memref<1x128xf32, #tpu.memory_space<vmem>>, vector<1x128xf32>
    %10 = vector.broadcast %9 : vector<1x128xf32> to vector<8x128xf32>
    %11 = arith.addf %8, %10 : vector<8x128xf32>
    %12 = math.tanh %11 : vector<8x128xf32>
    %c0_10 = arith.constant 0 : index
    %c0_11 = arith.constant 0 : index
    %13 = vector.load %arg6[%c0_10, %c0_11] : memref<1x128xf32, #tpu.memory_space<vmem>>, vector<1x128xf32>
    %14 = vector.broadcast %13 : vector<1x128xf32> to vector<8x128xf32>
    %15 = arith.mulf %12, %14 : vector<8x128xf32>
    %cst_12 = arith.constant dense<0.000000e+00> : vector<8xf32>
    %16 = vector.multi_reduction <add>, %15, %cst_12 [1] : vector<8x128xf32> to vector<8xf32>
    %17 = vector.shape_cast %16 : vector<8xf32> to vector<8x1xf32>
    %c0_13 = arith.constant 0 : index
    %c0_14 = arith.constant 0 : index
    %18 = vector.load %arg7[%c0_13, %c0_14] : memref<1x1xf32, #tpu.memory_space<vmem>>, vector<1x1xf32>
    %19 = vector.broadcast %18 : vector<1x1xf32> to vector<8x1xf32>
    %20 = arith.addf %17, %19 : vector<8x1xf32>
    %c0_15 = arith.constant 0 : index
    %c0_16 = arith.constant 0 : index
    %21 = vector.load %arg8[%c0_15, %c0_16] : memref<8x128xf32, #tpu.memory_space<vmem>>, vector<8x128xf32>
    tpu.vector_store %arg8[%c0_15, %c0_16], %12 {strides = array<i32>} : memref<8x128xf32, #tpu.memory_space<vmem>>, vector<8x128xf32>,
    %22 = vector.shape_cast %20 : vector<8x1xf32> to vector<8x1xf32>
    %23 = vector.broadcast %22 : vector<8x1xf32> to vector<8x128xf32>
    %c0_17 = arith.constant 0 : index
    %c0_18 = arith.constant 0 : index
    %24 = vector.load %arg9[%c0_17, %c0_18] : memref<8x128xf32, #tpu.memory_space<vmem>>, vector<8x128xf32>
    tpu.vector_store %arg9[%c0_17, %c0_18], %23 {strides = array<i32>} : memref<8x128xf32, #tpu.memory_space<vmem>>, vector<8x128xf32>,
    return
  }
  func.func @transform_0(%arg0: i32) -> (i32, i32) {
    %c0_i32 = arith.constant 0 : i32
    %c0_i32_0 = arith.constant 0 : i32
    return %arg0, %c0_i32 : i32, i32
  }
  func.func @transform_1(%arg0: i32) -> (i32, i32) {
    %c0_i32 = arith.constant 0 : i32
    %c0_i32_0 = arith.constant 0 : i32
    %c0_i32_1 = arith.constant 0 : i32
    return %c0_i32, %c0_i32_0 : i32, i32
  }
  func.func @transform_2(%arg0: i32) -> (i32, i32) {
    %c0_i32 = arith.constant 0 : i32
    %c0_i32_0 = arith.constant 0 : i32
    %c0_i32_1 = arith.constant 0 : i32
    return %c0_i32, %c0_i32_0 : i32, i32
  }
  func.func @transform_3(%arg0: i32) -> (i32, i32) {
    %c0_i32 = arith.constant 0 : i32
    %c0_i32_0 = arith.constant 0 : i32
    %c0_i32_1 = arith.constant 0 : i32
    return %c0_i32, %c0_i32_0 : i32, i32
  }
  func.func @transform_4(%arg0: i32) -> (i32, i32) {
    %c0_i32 = arith.constant 0 : i32
    %c0_i32_0 = arith.constant 0 : i32
    %c0_i32_1 = arith.constant 0 : i32
    return %c0_i32, %c0_i32_0 : i32, i32
  }
  func.func @transform_5(%arg0: i32) -> (i32, i32) {
    %c0_i32 = arith.constant 0 : i32
    %c0_i32_0 = arith.constant 0 : i32
    %c0_i32_1 = arith.constant 0 : i32
    return %c0_i32, %c0_i32_0 : i32, i32
  }
  func.func @transform_6(%arg0: i32) -> (i32, i32) {
    %c0_i32 = arith.constant 0 : i32
    %c0_i32_0 = arith.constant 0 : i32
    %c0_i32_1 = arith.constant 0 : i32
    return %c0_i32, %c0_i32_0 : i32, i32
  }
  func.func @transform_7(%arg0: i32) -> (i32, i32) {
    %c0_i32 = arith.constant 0 : i32
    %c0_i32_0 = arith.constant 0 : i32
    return %arg0, %c0_i32 : i32, i32
  }
  func.func @transform_8(%arg0: i32) -> (i32, i32) {
    %c0_i32 = arith.constant 0 : i32
    %c0_i32_0 = arith.constant 0 : i32
    return %arg0, %c0_i32 : i32, i32
  }
}

</mosaic_0001>

<llo_original>
// kernel: tpu_custom_call.1
$region0: #{tpu_custom_call.1}
  #allocation0 [shape = 'u32[]', space=smem, size = 0x4, offset = 0x4, fixed_abs, tag = 'smem constant byte address 0x4 - core index']
  #allocation1 [shape = 'u32[72,128]{1,0:T(1,128)}', space=vmem, size = 0x9000, scoped, tag = 'internal scratch']
  #allocation2 [shape = 'f32[1,1]{1,0:T(1,128)S(1)}', space=vmem, size = 0x200, scoped, tag = 'scoped memory for tpu_custom_call.1']
  %s0 = inlined_call_operand.hbm [shape: f32[8,16], index: 0, kind: input, shape index: {}]
  %s1 = inlined_call_operand.hbm [shape: f32[16,128], index: 1, kind: input, shape index: {}]
  %s2 = inlined_call_operand.vmem [shape: f32[1,128], index: 2, kind: input, shape index: {}]
  %s3 = inlined_call_operand.hbm [shape: f32[128,128], index: 3, kind: input, shape index: {}]
  %s4 = inlined_call_operand.vmem [shape: f32[1,128], index: 4, kind: input, shape index: {}]
  %s5 = inlined_call_operand.vmem [shape: f32[1,128], index: 5, kind: input, shape index: {}]
  %s6 = inlined_call_operand.<no memory space> [shape: f32[1,1], index: 6, kind: input, shape index: {}]
  %s7 = inlined_call_operand.hbm [shape: f32[8,128], index: 7, kind: output, shape index: {0}]
  %s8 = inlined_call_operand.hbm [shape: f32[8,128], index: 8, kind: output, shape index: {1}]
  %9 = xla_tuple %s7, %s8
  %s10 = sld [smem:[#allocation0]]
  $region58: #{tpu_custom_call.1} parent=0
    _
  %s12 = ssub.s32 1, %s10
  %s13 = scalar_select 0, %s12, %s10
  %v14 = vstv %s6
  %15 = vst [vmem:[#allocation2] sm:$0x1] %v14
  $region1: #{tpu_custom_call.1} parent=0
    #allocation3 [shape = 'u8[4096]{0}', space=vmem, size = 0x1000, scoped, tag = 'input window, operand 0, single buffered']
    #allocation4 [shape = 's32[1]{0}', space=sflag, size = 0x4, scoped, tag = 'scoped memory for tpu_custom_call.1']
    #allocation5 [shape = 's32[1]{0}', space=sflag, size = 0x4, scoped, tag = 'scoped memory for tpu_custom_call.1']
    #allocation6 [shape = 'u8[8192]{0}', space=vmem, size = 0x2000, scoped, tag = 'input window, operand 1, single buffered']
    #allocation7 [shape = 's32[1]{0}', space=sflag, size = 0x4, scoped, tag = 'scoped memory for tpu_custom_call.1']
    #allocation8 [shape = 'u8[65536]{0}', space=vmem, size = 0x10000, scoped, tag = 'input window, operand 3, single buffered']
    #allocation9 [shape = 'u8[4096]{0}', space=vmem, size = 0x1000, scoped, tag = 'output window, operand 0, single buffered']
    #allocation10 [shape = 'u8[4096]{0}', space=vmem, size = 0x1000, scoped, tag = 'output window, operand 1, single buffered']
    #allocation11 [shape = 's32[1]{0}', space=sflag, size = 0x4, scoped, tag = 'scoped memory for tpu_custom_call.1']
    %16 = vsyncpa [#allocation4], 0
    %17 = vsyncpa [#allocation7], 0
    %18 = vsyncpa [#allocation5], 0
    %19 = vsyncpa [#allocation11], 0
    // Predicated region
    $region2: #{tpu_custom_call.1} parent=1 // pred_check
      _
    $region3: #{tpu_custom_call.1} parent=1 // pred_check_branch
      %21 = sbr.rel (0) target = $region5
    $region4: #{tpu_custom_call.1} parent=1 // pred_region
      %23 = vsyncadd [#allocation4], 0
      %s25 = sshll.u32 %s0, 4
      %s26 = int_to_ptr.hbm [resolvable:$true] %s25
      %s27 = sshll.u32 [#allocation3], 4
      %s28 = int_to_ptr.vmem [resolvable:$true] %s27
      %30 = dma.hbm_to_vmem [thread:$0]  %s26, 128, %s28, [#allocation4]
    $region5: #{tpu_custom_call.1} parent=1 // pred_fallthru
      _
    // Predicated region
    $region6: #{tpu_custom_call.1} parent=1 // pred_check
      _
    $region7: #{tpu_custom_call.1} parent=1 // pred_check_branch
      %32 = sbr.rel (0) target = $region9
    $region8: #{tpu_custom_call.1} parent=1 // pred_region
      %34 = vsyncadd [#allocation7], 0
      %s35 = sshll.u32 %s1, 4
      %s36 = int_to_ptr.hbm [resolvable:$true] %s35
      %s37 = sshll.u32 [#allocation6], 4
      %s38 = int_to_ptr.vmem [resolvable:$true] %s37
      %43 = dma.hbm_to_vmem [thread:$0]  %s36, 256, %s38, [#allocation7], 128, 128, 8
    $region9: #{tpu_custom_call.1} parent=1 // pred_fallthru
      _
    // Predicated region
    $region10: #{tpu_custom_call.1} parent=1 // pred_check
      _
    $region11: #{tpu_custom_call.1} parent=1 // pred_check_branch
      %45 = sbr.rel (0) target = $region13
    $region12: #{tpu_custom_call.1} parent=1 // pred_region
      _
    $region13: #{tpu_custom_call.1} parent=1 // pred_fallthru
      _
    // Predicated region
    $region14: #{tpu_custom_call.1} parent=1 // pred_check
      _
    $region15: #{tpu_custom_call.1} parent=1 // pred_check_branch
      %47 = sbr.rel (0) target = $region17
    $region16: #{tpu_custom_call.1} parent=1 // pred_region
      %49 = vsyncadd [#allocation7], 0
      %s50 = sshll.u32 %s3, 4
      %s51 = int_to_ptr.hbm [resolvable:$true] %s50
      %s52 = sshll.u32 [#allocation8], 4
      %s53 = int_to_ptr.vmem [resolvable:$true] %s52
      %58 = dma.hbm_to_vmem [thread:$0]  %s51, 2048, %s53, [#allocation7], 128, 128, 8
    $region17: #{tpu_custom_call.1} parent=1 // pred_fallthru
      _
    // Predicated region
    $region18: #{tpu_custom_call.1} parent=1 // pred_check
      _
    $region19: #{tpu_custom_call.1} parent=1 // pred_check_branch
      %60 = sbr.rel (0) target = $region21
    $region20: #{tpu_custom_call.1} parent=1 // pred_region
      _
    $region21: #{tpu_custom_call.1} parent=1 // pred_fallthru
      _
    // Predicated region
    $region22: #{tpu_custom_call.1} parent=1 // pred_check
      _
    $region23: #{tpu_custom_call.1} parent=1 // pred_check_branch
      %62 = sbr.rel (0) target = $region25
    $region24: #{tpu_custom_call.1} parent=1 // pred_region
      _
    $region25: #{tpu_custom_call.1} parent=1 // pred_fallthru
      _
    // Predicated region
    $region26: #{tpu_custom_call.1} parent=1 // pred_check
      _
    $region27: #{tpu_custom_call.1} parent=1 // pred_check_branch
      %64 = sbr.rel (0) target = $region29
    $region28: #{tpu_custom_call.1} parent=1 // pred_region
      _
    $region29: #{tpu_custom_call.1} parent=1 // pred_fallthru
      _
    // Predicated region
    $region30: #{tpu_custom_call.1} parent=1 // pred_check
      _
    $region31: #{tpu_custom_call.1} parent=1 // pred_check_branch
      %66 = sbr.rel (0) target = $region33
    $region32: #{tpu_custom_call.1} parent=1 // pred_region
      %68 = dma.done [#allocation4], 128
    $region33: #{tpu_custom_call.1} parent=1 // pred_fallthru
      _
    // Predicated region
    $region34: #{tpu_custom_call.1} parent=1 // pred_check
      _
    $region35: #{tpu_custom_call.1} parent=1 // pred_check_branch
      %70 = sbr.rel (0) target = $region37
    $region36: #{tpu_custom_call.1} parent=1 // pred_region
      %72 = dma.done [#allocation7], 256
    $region37: #{tpu_custom_call.1} parent=1 // pred_fallthru
      _
    // Predicated region
    $region38: #{tpu_custom_call.1} parent=1 // pred_check
      _
    $region39: #{tpu_custom_call.1} parent=1 // pred_check_branch
      %74 = sbr.rel (0) target = $region41
    $region40: #{tpu_custom_call.1} parent=1 // pred_region
      %76 = dma.done [#allocation7], 2048
    $region41: #{tpu_custom_call.1} parent=1 // pred_fallthru
      _
    %v77 = vld [vmem:[#allocation3] sm:$0xff]
    %v78 = vld [vmem:[#allocation6] sm:$0xff]
    %v79 = vld [vmem:[#allocation6 + $0x8] sm:$0xff]
    %v80 = vld [vmem:[%s2] sm:$0x1]
    %v82 = vperm.slane %v80, 0
    %vm84 = vcmask 130048
    %v86 = vsel %vm84, %v77, 0
    %88 = vmatpush.msra.mxu0 0.0
    %89 = vmatpush.msra.mxu0 0.0
    %90 = vmatpush.msra.mxu0 0.0
    %91 = vmatpush.msra.mxu0 0.0
    %92 = vmatpush.msra.mxu0 0.0
    %93 = vmatpush.msra.mxu0 0.0
    %94 = vmatpush.msra.mxu0 0.0
    %95 = vmatpush.msra.mxu0 0.0
    %96 = vmatpush.msra.mxu0 0.0
    %97 = vmatpush.msra.mxu0 0.0
    %98 = vmatpush.msra.mxu0 0.0
    %99 = vmatpush.msra.mxu0 0.0
    %100 = vmatpush.msra.mxu0 0.0
    %101 = vmatpush.msra.mxu0 0.0
    %102 = vmatpush.msra.mxu0 %v79
    %103 = vmatpush.msra.mxu0 %v78
    %104 = vmatmul.f32.gmra.mxu0 %v86
    %v105 = vpop.f32.mrf.mxu0
    %v106 = vadd.f32 %v82, %v105
    %107 = vdwg.mxu0
    %v108 = vtanh.pop %v106
    %v109 = vld [vmem:[#allocation8] sm:$0xff]
    %v110 = vld [vmem:[#allocation8 + $0x8] sm:$0xff]
    %v111 = vld [vmem:[#allocation8 + $0x10] sm:$0xff]
    %v112 = vld [vmem:[#allocation8 + $0x18] sm:$0xff]
    %v113 = vld [vmem:[#allocation8 + $0x20] sm:$0xff]
    %v114 = vld [vmem:[#allocation8 + $0x28] sm:$0xff]
    %v115 = vld [vmem:[#allocation8 + $0x30] sm:$0xff]
    %v116 = vld [vmem:[#allocation8 + $0x38] sm:$0xff]
    %v117 = vld [vmem:[#allocation8 + $0x40] sm:$0xff]
    %v118 = vld [vmem:[#allocation8 + $0x48] sm:$0xff]
    %v119 = vld [vmem:[#allocation8 + $0x50] sm:$0xff]
    %v120 = vld [vmem:[#allocation8 + $0x58] sm:$0xff]
    %v121 = vld [vmem:[#allocation8 + $0x60] sm:$0xff]
    %v122 = vld [vmem:[#allocation8 + $0x68] sm:$0xff]
    %v123 = vld [vmem:[#allocation8 + $0x70] sm:$0xff]
    %v124 = vld [vmem:[#allocation8 + $0x78] sm:$0xff]
    %v125 = vld [vmem:[%s4] sm:$0x1]
    %v127 = vperm.slane %v125, 0
    %129 = vmatpush.msra.mxu0 %v124
    %130 = vmatpush.msra.mxu0 %v123
    %131 = vmatpush.msra.mxu0 %v122
    %132 = vmatpush.msra.mxu0 %v121
    %133 = vmatpush.msra.mxu0 %v120
    %134 = vmatpush.msra.mxu0 %v119
    %135 = vmatpush.msra.mxu0 %v118
    %136 = vmatpush.msra.mxu0 %v117
    %137 = vmatpush.msra.mxu0 %v116
    %138 = vmatpush.msra.mxu0 %v115
    %139 = vmatpush.msra.mxu0 %v114
    %140 = vmatpush.msra.mxu0 %v113
    %141 = vmatpush.msra.mxu0 %v112
    %142 = vmatpush.msra.mxu0 %v111
    %143 = vmatpush.msra.mxu0 %v110
    %144 = vmatpush.msra.mxu0 %v109
    %145 = vmatmul.f32.gmra.mxu0 %v108
    %v146 = vpop.f32.mrf.mxu0
    %v147 = vadd.f32 %v127, %v146
    %148 = vdwg.mxu0
    %v149 = vtanh.pop %v147
    %v150 = vld [vmem:[%s5] sm:$0x1]
    %v152 = vperm.slane %v150, 0
    %v154 = vmul.f32 %v149, %v152
    %155 = vadd.xlane.f32.xlu0 %v154
    %v156 = vpop.xlane.xlu0 %155
    %v157 = vld [vmem:[#allocation2] sm:$0x1]
    %v159 = vperm.slane %v157, 0
    %v161 = vadd.f32 %v156, %v159
    %162 = vst [vmem:[#allocation9] sm:$0xff] %v149
    %164 = vset.pattern.permute.xlu0 0
    %165 = vperm.xlu0 %164, %v161
    %v166 = vpop.permute.xlu0 %165
    %168 = vst [vmem:[#allocation10] sm:$0xff] %v166
    // Predicated region
    $region42: #{tpu_custom_call.1} parent=1 // pred_check
      _
    $region43: #{tpu_custom_call.1} parent=1 // pred_check_branch
      %170 = sbr.rel (0) target = $region45
    $region44: #{tpu_custom_call.1} parent=1 // pred_region
      %172 = vsyncadd [#allocation5], 0
      %s174 = sshll.u32 [#allocation9], 4
      %s175 = int_to_ptr.vmem [resolvable:$true] %s174
      %s176 = sshll.u32 %s7, 4
      %s177 = int_to_ptr.hbm [resolvable:$true] %s176
      %179 = dma.vmem_to_hbm [thread:$0]  %s175, 128, %s177, [#allocation5]
    $region45: #{tpu_custom_call.1} parent=1 // pred_fallthru
      _
    // Predicated region
    $region46: #{tpu_custom_call.1} parent=1 // pred_check
      _
    $region47: #{tpu_custom_call.1} parent=1 // pred_check_branch
      %181 = sbr.rel (0) target = $region49
    $region48: #{tpu_custom_call.1} parent=1 // pred_region
      %183 = vsyncadd [#allocation11], 0
      %s185 = sshll.u32 [#allocation10], 4
      %s186 = int_to_ptr.vmem [resolvable:$true] %s185
      %s187 = sshll.u32 %s8, 4
      %s188 = int_to_ptr.hbm [resolvable:$true] %s187
      %190 = dma.vmem_to_hbm [thread:$0]  %s186, 128, %s188, [#allocation11]
    $region49: #{tpu_custom_call.1} parent=1 // pred_fallthru
      _
    // Predicated region
    $region50: #{tpu_custom_call.1} parent=1 // pred_check
      _
    $region51: #{tpu_custom_call.1} parent=1 // pred_check_branch
      %192 = sbr.rel (0) target = $region53
    $region52: #{tpu_custom_call.1} parent=1 // pred_region
      %194 = dma.done [#allocation5], 128
    $region53: #{tpu_custom_call.1} parent=1 // pred_fallthru
      _
    // Predicated region
    $region54: #{tpu_custom_call.1} parent=1 // pred_check
      _
    $region55: #{tpu_custom_call.1} parent=1 // pred_check_branch
      %196 = sbr.rel (0) target = $region57
    $region56: #{tpu_custom_call.1} parent=1 // pred_region
      %198 = dma.done [#allocation11], 128
    $region57: #{tpu_custom_call.1} parent=1 // pred_fallthru
      _
    %199 = vsyncpa [#allocation4], 1
    %200 = vsyncpa [#allocation7], 1
    %201 = vsyncpa [#allocation5], 1
    %202 = vsyncpa [#allocation11], 1

</llo_original>
